<compile_context>
chip_gen: v6e
topology: v6e:2x2x1
jax: 0.10.0
libtpu: 0.0.40
codegen_flags: <defaults>
</compile_context>

<pallas_src>
import jax
import jax.numpy as jnp
from jax.experimental import pallas as pl
from jax.experimental.pallas import tpu as pltpu


# -----------------------------------------------------------------------------
# Kernel
# -----------------------------------------------------------------------------
def _make_mlp_kernel(num_layers: int, in_dim: int):
    """Builds kernel(x_ref, w0T, b0, w1T, b1, ..., out_ref).

    x_ref:  (in_dim, TILE)  -- batch on the lane axis
    wiT:    (out_i, in_i)   -- pre-transposed so the kernel computes W^T @ h
    bi:     (out_i, 1)
    out:    (out_dim, TILE)
    """

    def kernel(*refs):
        x_ref = refs[0]
        out_ref = refs[-1]
        p = refs[1:-1]
        assert len(p) == 2 * num_layers

        # ---- layer 0 on the VPU: K = in_dim (=3) is far too small for the MXU ----
        w0 = p[0][...]            # (H0, in_dim)
        b0 = p[1][...]            # (H0, 1)
        h = b0
        for f in range(in_dim):
            # (H0, 1) * (1, TILE) -> (H0, TILE): pure VPU broadcast multiply-add
            h = h + w0[:, f:f + 1] * x_ref[f:f + 1, :]
        if num_layers > 1:
            h = jnp.tanh(h)

        # ---- remaining layers on the MXU ----
        for i in range(1, num_layers):
            w = p[2 * i][...]         # (out, in)
            b = p[2 * i + 1][...]     # (out, 1)
            h = jnp.dot(w, h, preferred_element_type=jnp.float32) + b
            if i < num_layers - 1:
                h = jnp.tanh(h)

        out_ref[...] = h.astype(out_ref.dtype)

    return kernel


# -----------------------------------------------------------------------------
# Wrapper
# -----------------------------------------------------------------------------
def pinn_net_forward(x, y, t, params, *, row_tile=512):
    """Forward pass of PINN_Net.

    x, y, t: (N, 1) float32 arrays.
    params:  list of (W, b) with W shape (in, out) (PyTorch W.T) and b shape (out,) or (1, out).
    Returns: (N, out_dim) float32 prediction (same as the PyTorch module).
    """
    assert row_tile % 128 == 0, "row_tile must be a multiple of 128 (lane width)"

    N = x.shape[0]
    in_dim = 3
    out_dim = params[-1][0].shape[1]
    num_layers = len(params)

    # Lane-dense transposed input: (3, N), batch on the lane axis.
    X_T = jnp.concatenate(
        [x.reshape(1, N), y.reshape(1, N), t.reshape(1, N)], axis=0
    ).astype(jnp.float32)

    grid = pl.cdiv(N, row_tile)
    n_pad = grid * row_tile
    if n_pad != N:
        X_T = jnp.pad(X_T, ((0, 0), (0, n_pad - N)))

    kernel = _make_mlp_kernel(num_layers, in_dim)

    in_specs = [pl.BlockSpec((in_dim, row_tile), lambda i: (0, i))]
    flat_params = []
    for (w, b) in params:
        w_t = jnp.asarray(w, jnp.float32).T                  # (out, in)
        b_c = jnp.asarray(b, jnp.float32).reshape(-1, 1)     # (out, 1)
        # Full-array blocks with a constant index map: stay VMEM-resident across grid steps.
        in_specs.append(pl.BlockSpec(w_t.shape, lambda i: (0, 0)))
        in_specs.append(pl.BlockSpec(b_c.shape, lambda i: (0, 0)))
        flat_params.append(w_t)
        flat_params.append(b_c)

    out_specs = pl.BlockSpec((out_dim, row_tile), lambda i: (0, i))

    fn = pl.pallas_call(
        kernel,
        out_shape=jax.ShapeDtypeStruct((out_dim, n_pad), jnp.float32),
        grid_spec=pltpu.PrefetchScalarGridSpec(
            num_scalar_prefetch=0,
            grid=(grid,),
            in_specs=in_specs,
            out_specs=out_specs,
        ),
        compiler_params=pltpu.CompilerParams(
            # Batch tiles are independent -> shard across TensorCores on v7x.
            dimension_semantics=("parallel",),
        ),
    )
    out_t = fn(X_T, *flat_params)          # (out_dim, n_pad)
    return out_t[:, :N].T                  # (N, out_dim), matches PyTorch output layout


# -----------------------------------------------------------------------------
# Deterministic parameter init (mirrors PINN_Net.Initial_param):
#   xavier_normal_ on weights (gain = 1), zeros on biases.
# -----------------------------------------------------------------------------
def init_pinn_params(key, layer_mat):
    params = []
    for i in range(len(layer_mat) - 1):
        fan_in, fan_out = layer_mat[i], layer_mat[i + 1]
        key, sub = jax.random.split(key)
        std = (2.0 / (fan_in + fan_out)) ** 0.5
        w = std * jax.random.normal(sub, (fan_in, fan_out), dtype=jnp.float32)
        b = jnp.zeros((1, fan_out), dtype=jnp.float32)
        params.append((w, b))
    return params


def pinn_reference(x, y, t, params):
    """Plain JAX reference matching the PyTorch forward (row-major layout)."""
    h = jnp.concatenate([x, y, t], axis=1).astype(jnp.float32)
    n = len(params)
    for i, (w, b) in enumerate(params):
        h = h @ w + b
        if i < n - 1:
            h = jnp.tanh(h)
    return h


# -----------------------------------------------------------------------------
# Main
# -----------------------------------------------------------------------------
if __name__ == "__main__":
    # layer_mat as typically used for the 2D NS PINN: input (x, y, t) -> 2 outputs
    layer_mat = [3, 32, 32, 32, 2]

    key = jax.random.PRNGKey(0)
    k_params, kx, ky, kt = jax.random.split(key, 4)

    params = init_pinn_params(k_params, layer_mat)

    # lam1 / lam2 exist as nn.Parameters in the module but are unused in forward();
    # kept here only for parity with __init__.
    lam1 = jnp.array([1.0], dtype=jnp.float32)
    lam2 = jnp.array([0.1], dtype=jnp.float32)

    # N deliberately NOT a multiple of the tile: exercises cdiv-grid + padding path,
    # and gives >= 2 parallel grid steps (both TensorCores busy on v7x).
    N = 1000
    x = jax.random.normal(kx, (N, 1), dtype=jnp.float32)
    y = jax.random.normal(ky, (N, 1), dtype=jnp.float32)
    t = jax.random.normal(kt, (N, 1), dtype=jnp.float32)

    out = pinn_net_forward(x, y, t, params, row_tile=512)
    out = jax.block_until_ready(out)

    ref = pinn_reference(x, y, t, params)
    assert out.shape == (N, layer_mat[-1])
    assert jnp.allclose(out, ref, atol=1e-4, rtol=1e-4), "mismatch vs reference"

    print("KERNEL_OK")
</pallas_src>

<mosaic_0001>
module attributes {stable_mosaic.version = 11 : i64} {
  func.func @kernel(%arg0: i32, %arg1: memref<3x512xf32, #tpu.memory_space<vmem>>, %arg2: memref<32x3xf32, #tpu.memory_space<vmem>>, %arg3: memref<32x1xf32, #tpu.memory_space<vmem>>, %arg4: memref<32x32xf32, #tpu.memory_space<vmem>>, %arg5: memref<32x1xf32, #tpu.memory_space<vmem>>, %arg6: memref<32x32xf32, #tpu.memory_space<vmem>>, %arg7: memref<32x1xf32, #tpu.memory_space<vmem>>, %arg8: memref<2x32xf32, #tpu.memory_space<vmem>>, %arg9: memref<2x1xf32, #tpu.memory_space<vmem>>, %arg10: memref<2x512xf32, #tpu.memory_space<vmem>>) attributes {dimension_semantics = [#tpu.dimension_semantics<parallel>], iteration_bounds = array<i64: 2>, scalar_prefetch = 0 : i64, scratch_operands = 0 : i64, tpu.core_type = #tpu.core_type<tc>, window_params = [{transform_indices = @transform_0, window_bounds = array<i64: 3, 512>}, {pipeline_mode = #tpu.pipeline_mode<synchronous>, transform_indices = @transform_1, window_bounds = array<i64: 32, 3>}, {pipeline_mode = #tpu.pipeline_mode<synchronous>, transform_indices = @transform_2, window_bounds = array<i64: 32, 1>}, {pipeline_mode = #tpu.pipeline_mode<synchronous>, transform_indices = @transform_3, window_bounds = array<i64: 32, 32>}, {pipeline_mode = #tpu.pipeline_mode<synchronous>, transform_indices = @transform_4, window_bounds = array<i64: 32, 1>}, {pipeline_mode = #tpu.pipeline_mode<synchronous>, transform_indices = @transform_5, window_bounds = array<i64: 32, 32>}, {pipeline_mode = #tpu.pipeline_mode<synchronous>, transform_indices = @transform_6, window_bounds = array<i64: 32, 1>}, {pipeline_mode = #tpu.pipeline_mode<synchronous>, transform_indices = @transform_7, window_bounds = array<i64: 2, 32>}, {pipeline_mode = #tpu.pipeline_mode<synchronous>, transform_indices = @transform_8, window_bounds = array<i64: 2, 1>}, {transform_indices = @transform_9, window_bounds = array<i64: 2, 512>}]} {
    %c0 = arith.constant 0 : index
    %c0_0 = arith.constant 0 : index
    %0 = vector.load %arg2[%c0, %c0_0] : memref<32x3xf32, #tpu.memory_space<vmem>>, vector<32x3xf32>
    %c0_1 = arith.constant 0 : index
    %c0_2 = arith.constant 0 : index
    %1 = vector.load %arg3[%c0_1, %c0_2] : memref<32x1xf32, #tpu.memory_space<vmem>>, vector<32x1xf32>
    %2 = vector.extract_strided_slice %0 {offsets = [0, 0], sizes = [32, 1], strides = [1, 1]} : vector<32x3xf32> to vector<32x1xf32>
    %c0_3 = arith.constant 0 : index
    %c0_4 = arith.constant 0 : index
    %3 = vector.load %arg1[%c0_3, %c0_4] : memref<3x512xf32, #tpu.memory_space<vmem>>, vector<1x512xf32>
    %4 = vector.broadcast %2 : vector<32x1xf32> to vector<32x512xf32>
    %5 = vector.broadcast %3 : vector<1x512xf32> to vector<32x512xf32>
    %6 = arith.mulf %4, %5 : vector<32x512xf32>
    %7 = vector.broadcast %1 : vector<32x1xf32> to vector<32x512xf32>
    %8 = arith.addf %7, %6 : vector<32x512xf32>
    %9 = vector.extract_strided_slice %0 {offsets = [0, 1], sizes = [32, 1], strides = [1, 1]} : vector<32x3xf32> to vector<32x1xf32>
    %c1 = arith.constant 1 : index
    %c0_5 = arith.constant 0 : index
    %10 = vector.load %arg1[%c1, %c0_5] : memref<3x512xf32, #tpu.memory_space<vmem>>, vector<1x512xf32>
    %11 = vector.broadcast %9 : vector<32x1xf32> to vector<32x512xf32>
    %12 = vector.broadcast %10 : vector<1x512xf32> to vector<32x512xf32>
    %13 = arith.mulf %11, %12 : vector<32x512xf32>
    %14 = arith.addf %8, %13 : vector<32x512xf32>
    %15 = vector.extract_strided_slice %0 {offsets = [0, 2], sizes = [32, 1], strides = [1, 1]} : vector<32x3xf32> to vector<32x1xf32>
    %c2 = arith.constant 2 : index
    %c0_6 = arith.constant 0 : index
    %16 = vector.load %arg1[%c2, %c0_6] : memref<3x512xf32, #tpu.memory_space<vmem>>, vector<1x512xf32>
    %17 = vector.broadcast %15 : vector<32x1xf32> to vector<32x512xf32>
    %18 = vector.broadcast %16 : vector<1x512xf32> to vector<32x512xf32>
    %19 = arith.mulf %17, %18 : vector<32x512xf32>
    %20 = arith.addf %14, %19 : vector<32x512xf32>
    %21 = math.tanh %20 : vector<32x512xf32>
    %c0_7 = arith.constant 0 : index
    %c0_8 = arith.constant 0 : index
    %22 = vector.load %arg4[%c0_7, %c0_8] : memref<32x32xf32, #tpu.memory_space<vmem>>, vector<32x32xf32>
    %c0_9 = arith.constant 0 : index
    %c0_10 = arith.constant 0 : index
    %23 = vector.load %arg5[%c0_9, %c0_10] : memref<32x1xf32, #tpu.memory_space<vmem>>, vector<32x1xf32>
    %cst = arith.constant dense<0.000000e+00> : vector<32x512xf32>
    %24 = tpu.matmul %22, %21, %cst {dimension_numbers = #tpu.dot_dimension_numbers<[1], [0], [0], [1], [0, 0, 1, 1], [], []>} : vector<32x32xf32>, vector<32x512xf32>, vector<32x512xf32> -> vector<32x512xf32>
    %25 = vector.broadcast %23 : vector<32x1xf32> to vector<32x512xf32>
    %26 = arith.addf %24, %25 : vector<32x512xf32>
    %27 = math.tanh %26 : vector<32x512xf32>
    %c0_11 = arith.constant 0 : index
    %c0_12 = arith.constant 0 : index
    %28 = vector.load %arg6[%c0_11, %c0_12] : memref<32x32xf32, #tpu.memory_space<vmem>>, vector<32x32xf32>
    %c0_13 = arith.constant 0 : index
    %c0_14 = arith.constant 0 : index
    %29 = vector.load %arg7[%c0_13, %c0_14] : memref<32x1xf32, #tpu.memory_space<vmem>>, vector<32x1xf32>
    %cst_15 = arith.constant dense<0.000000e+00> : vector<32x512xf32>
    %30 = tpu.matmul %28, %27, %cst_15 {dimension_numbers = #tpu.dot_dimension_numbers<[1], [0], [0], [1], [0, 0, 1, 1], [], []>} : vector<32x32xf32>, vector<32x512xf32>, vector<32x512xf32> -> vector<32x512xf32>
    %31 = vector.broadcast %29 : vector<32x1xf32> to vector<32x512xf32>
    %32 = arith.addf %30, %31 : vector<32x512xf32>
    %33 = math.tanh %32 : vector<32x512xf32>
    %c0_16 = arith.constant 0 : index
    %c0_17 = arith.constant 0 : index
    %34 = vector.load %arg8[%c0_16, %c0_17] : memref<2x32xf32, #tpu.memory_space<vmem>>, vector<2x32xf32>
    %c0_18 = arith.constant 0 : index
    %c0_19 = arith.constant 0 : index
    %35 = vector.load %arg9[%c0_18, %c0_19] : memref<2x1xf32, #tpu.memory_space<vmem>>, vector<2x1xf32>
    %cst_20 = arith.constant dense<0.000000e+00> : vector<2x512xf32>
    %36 = tpu.matmul %34, %33, %cst_20 {dimension_numbers = #tpu.dot_dimension_numbers<[1], [0], [0], [1], [0, 0, 1, 1], [], []>} : vector<2x32xf32>, vector<32x512xf32>, vector<2x512xf32> -> vector<2x512xf32>
    %37 = vector.broadcast %35 : vector<2x1xf32> to vector<2x512xf32>
    %38 = arith.addf %36, %37 : vector<2x512xf32>
    %c0_21 = arith.constant 0 : index
    %c0_22 = arith.constant 0 : index
    %39 = vector.load %arg10[%c0_21, %c0_22] : memref<2x512xf32, #tpu.memory_space<vmem>>, vector<2x512xf32>
    tpu.vector_store %arg10[%c0_21, %c0_22], %38 {strides = array<i32>} : memref<2x512xf32, #tpu.memory_space<vmem>>, vector<2x512xf32>,
    return
  }
  func.func @transform_0(%arg0: i32) -> (i32, i32) {
    %c0_i32 = arith.constant 0 : i32
    %c0_i32_0 = arith.constant 0 : i32
    return %c0_i32, %arg0 : i32, i32
  }
  func.func @transform_1(%arg0: i32) -> (i32, i32) {
    %c0_i32 = arith.constant 0 : i32
    %c0_i32_0 = arith.constant 0 : i32
    %c0_i32_1 = arith.constant 0 : i32
    return %c0_i32, %c0_i32_0 : i32, i32
  }
  func.func @transform_2(%arg0: i32) -> (i32, i32) {
    %c0_i32 = arith.constant 0 : i32
    %c0_i32_0 = arith.constant 0 : i32
    %c0_i32_1 = arith.constant 0 : i32
    return %c0_i32, %c0_i32_0 : i32, i32
  }
  func.func @transform_3(%arg0: i32) -> (i32, i32) {
    %c0_i32 = arith.constant 0 : i32
    %c0_i32_0 = arith.constant 0 : i32
    %c0_i32_1 = arith.constant 0 : i32
    return %c0_i32, %c0_i32_0 : i32, i32
  }
  func.func @transform_4(%arg0: i32) -> (i32, i32) {
    %c0_i32 = arith.constant 0 : i32
    %c0_i32_0 = arith.constant 0 : i32
    %c0_i32_1 = arith.constant 0 : i32
    return %c0_i32, %c0_i32_0 : i32, i32
  }
  func.func @transform_5(%arg0: i32) -> (i32, i32) {
    %c0_i32 = arith.constant 0 : i32
    %c0_i32_0 = arith.constant 0 : i32
    %c0_i32_1 = arith.constant 0 : i32
    return %c0_i32, %c0_i32_0 : i32, i32
  }
  func.func @transform_6(%arg0: i32) -> (i32, i32) {
    %c0_i32 = arith.constant 0 : i32
    %c0_i32_0 = arith.constant 0 : i32
    %c0_i32_1 = arith.constant 0 : i32
    return %c0_i32, %c0_i32_0 : i32, i32
  }
  func.func @transform_7(%arg0: i32) -> (i32, i32) {
    %c0_i32 = arith.constant 0 : i32
    %c0_i32_0 = arith.constant 0 : i32
    %c0_i32_1 = arith.constant 0 : i32
    return %c0_i32, %c0_i32_0 : i32, i32
  }
  func.func @transform_8(%arg0: i32) -> (i32, i32) {
    %c0_i32 = arith.constant 0 : i32
    %c0_i32_0 = arith.constant 0 : i32
    %c0_i32_1 = arith.constant 0 : i32
    return %c0_i32, %c0_i32_0 : i32, i32
  }
  func.func @transform_9(%arg0: i32) -> (i32, i32) {
    %c0_i32 = arith.constant 0 : i32
    %c0_i32_0 = arith.constant 0 : i32
    return %c0_i32, %arg0 : i32, i32
  }
}

</mosaic_0001>

<llo_original>
// kernel: tpu_custom_call.1
$region0: #{tpu_custom_call.1}
  #allocation0 [shape = 'u32[]', space=smem, size = 0x4, offset = 0x4, fixed_abs, tag = 'smem constant byte address 0x4 - core index']
  #allocation1 [shape = 'u32[144,128]{1,0:T(1,128)}', space=vmem, size = 0x12000, scoped, tag = 'internal scratch']
  %s0 = inlined_call_operand.vmem [shape: f32[3,1024], index: 0, kind: input, shape index: {}]
  %s1 = inlined_call_operand.vmem [shape: f32[32,3], index: 1, kind: input, shape index: {}]
  %s2 = inlined_call_operand.vmem [shape: f32[32,1], index: 2, kind: input, shape index: {}]
  %s3 = inlined_call_operand.vmem [shape: f32[32,32], index: 3, kind: input, shape index: {}]
  %s4 = inlined_call_operand.vmem [shape: f32[32,1], index: 4, kind: input, shape index: {}]
  %s5 = inlined_call_operand.vmem [shape: f32[32,32], index: 5, kind: input, shape index: {}]
  %s6 = inlined_call_operand.vmem [shape: f32[32,1], index: 6, kind: input, shape index: {}]
  %s7 = inlined_call_operand.vmem [shape: f32[2,32], index: 7, kind: input, shape index: {}]
  %s8 = inlined_call_operand.vmem [shape: f32[2,1], index: 8, kind: input, shape index: {}]
  %s9 = inlined_call_operand.hbm [shape: f32[2,1024], index: 9, kind: output, shape index: {}]
  %s10 = sld [smem:[#allocation0]]
  $region69: #{tpu_custom_call.1} parent=0
    _
  %s12 = ssub.s32 1, %s10
  %s13 = scalar_select 0, %s12, %s10
  $region1: #{tpu_custom_call.1} parent=0
    #allocation2 [shape = 'u8[8192]{0}', space=vmem, size = 0x2000, scoped, tag = 'output window, operand 0']
    #allocation3 [shape = 's32[2]{0}', space=sflag, size = 0x8, scoped, tag = 'scoped memory for tpu_custom_call.1']
    %14 = vsyncpa [#allocation3], 0
    %s15 = scalar_lea.sflag [#allocation3], 1
    %16 = vsyncpa %s15, 0
    loop: start=0, step=1, limit=4
    $region2: #{tpu_custom_call.1} parent=1 // loop_pre_header
      _
    $region3: #{tpu_custom_call.1} parent=1 // loop_header
      %s18 = sphi 0, %s22
      %p19 = scmp.ge.s32.totalorder %s18, 4
      %s28 = sphi 0, %s30
      %s31 = sphi 0, %s28
      %s32 = sphi 0, %s31
      %s48 = sphi 0, %s32
      %s52 = sphi 0, %s52
      %s54 = sphi 0, %s52
      %s55 = sphi 0, %s54
      %s69 = sphi 0, %s55
      %s73 = sphi 0, %s73
      %s75 = sphi 0, %s73
      %s76 = sphi 0, %s75
      %s90 = sphi 0, %s76
      %s94 = sphi 0, %s94
      %s96 = sphi 0, %s94
      %s97 = sphi 0, %s96
      %s111 = sphi 0, %s97
      %s115 = sphi 0, %s115
      %s117 = sphi 0, %s115
      %s118 = sphi 0, %s117
      %s132 = sphi 0, %s118
      %s136 = sphi 0, %s136
      %s138 = sphi 0, %s136
      %s139 = sphi 0, %s138
      %s153 = sphi 0, %s139
      %s157 = sphi 0, %s157
      %s159 = sphi 0, %s157
      %s160 = sphi 0, %s159
      %s174 = sphi 0, %s160
      %s178 = sphi 0, %s178
      %s180 = sphi 0, %s178
      %s181 = sphi 0, %s180
      %s195 = sphi 0, %s181
      %s199 = sphi 0, %s199
      %s201 = sphi 0, %s199
      %s202 = sphi 0, %s201
      %s216 = sphi 0, %s202
      %s222 = sphi 0, %s224
      %s225 = sphi 0, %s222
      %s226 = sphi 0, %s225
      %s242 = sphi 0, %s226
    $region4: #{tpu_custom_call.1} parent=1 // loop_header_branch
      %21 = sbr.rel (%p19) target = $region8
    $region5: #{tpu_custom_call.1} parent=1 // loop_body
      %s23 = ssub.s32 %s18, 1
      %s24 = ssub.s32 %s18, 2
      %s25 = sadd.s32 %s18, 1
      %s26 = ssub.s32 %s18, %s25
      %p27 = scmp.eq.s32.totalorder %s26, 0
      %s29 = sadd.s32 %s28, 1
      %s30 = scalar_select %p27, %s28, %s29
      %p33 = pneg %p27
      %p34 = scmp.eq.s32.totalorder %s18, 1
      %p35 = por %p33, %p34
      %p36 = scmp.ne.s32.totalorder %s28, %s31
      %p37 = scmp.eq.s32.totalorder %s18, 0
      %p38 = por %p36, %p37
      %p39 = scmp.ne.s32.totalorder %s28, %s31
      %p40 = scmp.eq.s32.totalorder %s23, 1
      %p41 = por %p39, %p40
      %p42 = scmp.ne.s32.totalorder %s31, %s32
      %p43 = scmp.eq.s32.totalorder %s23, 0
      %p44 = por %p42, %p43
      %p45 = scmp.ne.s32.totalorder %s31, %s32
      %p46 = scmp.eq.s32.totalorder %s24, 1
      %p47 = por %p45, %p46
      %p49 = scmp.ne.s32.totalorder %s32, %s48
      %p50 = scmp.eq.s32.totalorder %s24, 0
      %p51 = por %p49, %p50
      %s53 = sadd.s32 %s52, 1
      %p56 = scmp.eq.s32.totalorder %s18, 1
      %p57 = scmp.ne.s32.totalorder %s52, %s54
      %p58 = scmp.eq.s32.totalorder %s18, 0
      %p59 = por %p57, %p58
      %p60 = scmp.ne.s32.totalorder %s52, %s54
      %p61 = scmp.eq.s32.totalorder %s23, 1
      %p62 = por %p60, %p61
      %p63 = scmp.ne.s32.totalorder %s54, %s55
      %p64 = scmp.eq.s32.totalorder %s23, 0
      %p65 = por %p63, %p64
      %p66 = scmp.ne.s32.totalorder %s54, %s55
      %p67 = scmp.eq.s32.totalorder %s24, 1
      %p68 = por %p66, %p67
      %p70 = scmp.ne.s32.totalorder %s55, %s69
      %p71 = scmp.eq.s32.totalorder %s24, 0
      %p72 = por %p70, %p71
      %s74 = sadd.s32 %s73, 1
      %p77 = scmp.eq.s32.totalorder %s18, 1
      %p78 = scmp.ne.s32.totalorder %s73, %s75
      %p79 = scmp.eq.s32.totalorder %s18, 0
      %p80 = por %p78, %p79
      %p81 = scmp.ne.s32.totalorder %s73, %s75
      %p82 = scmp.eq.s32.totalorder %s23, 1
      %p83 = por %p81, %p82
      %p84 = scmp.ne.s32.totalorder %s75, %s76
      %p85 = scmp.eq.s32.totalorder %s23, 0
      %p86 = por %p84, %p85
      %p87 = scmp.ne.s32.totalorder %s75, %s76
      %p88 = scmp.eq.s32.totalorder %s24, 1
      %p89 = por %p87, %p88
      %p91 = scmp.ne.s32.totalorder %s76, %s90
      %p92 = scmp.eq.s32.totalorder %s24, 0
      %p93 = por %p91, %p92
      %s95 = sadd.s32 %s94, 1
      %p98 = scmp.eq.s32.totalorder %s18, 1
      %p99 = scmp.ne.s32.totalorder %s94, %s96
      %p100 = scmp.eq.s32.totalorder %s18, 0
      %p101 = por %p99, %p100
      %p102 = scmp.ne.s32.totalorder %s94, %s96
      %p103 = scmp.eq.s32.totalorder %s23, 1
      %p104 = por %p102, %p103
      %p105 = scmp.ne.s32.totalorder %s96, %s97
      %p106 = scmp.eq.s32.totalorder %s23, 0
      %p107 = por %p105, %p106
      %p108 = scmp.ne.s32.totalorder %s96, %s97
      %p109 = scmp.eq.s32.totalorder %s24, 1
      %p110 = por %p108, %p109
      %p112 = scmp.ne.s32.totalorder %s97, %s111
      %p113 = scmp.eq.s32.totalorder %s24, 0
      %p114 = por %p112, %p113
      %s116 = sadd.s32 %s115, 1
      %p119 = scmp.eq.s32.totalorder %s18, 1
      %p120 = scmp.ne.s32.totalorder %s115, %s117
      %p121 = scmp.eq.s32.totalorder %s18, 0
      %p122 = por %p120, %p121
      %p123 = scmp.ne.s32.totalorder %s115, %s117
      %p124 = scmp.eq.s32.totalorder %s23, 1
      %p125 = por %p123, %p124
      %p126 = scmp.ne.s32.totalorder %s117, %s118
      %p127 = scmp.eq.s32.totalorder %s23, 0
      %p128 = por %p126, %p127
      %p129 = scmp.ne.s32.totalorder %s117, %s118
      %p130 = scmp.eq.s32.totalorder %s24, 1
      %p131 = por %p129, %p130
      %p133 = scmp.ne.s32.totalorder %s118, %s132
      %p134 = scmp.eq.s32.totalorder %s24, 0
      %p135 = por %p133, %p134
      %s137 = sadd.s32 %s136, 1
      %p140 = scmp.eq.s32.totalorder %s18, 1
      %p141 = scmp.ne.s32.totalorder %s136, %s138
      %p142 = scmp.eq.s32.totalorder %s18, 0
      %p143 = por %p141, %p142
      %p144 = scmp.ne.s32.totalorder %s136, %s138
      %p145 = scmp.eq.s32.totalorder %s23, 1
      %p146 = por %p144, %p145
      %p147 = scmp.ne.s32.totalorder %s138, %s139
      %p148 = scmp.eq.s32.totalorder %s23, 0
      %p149 = por %p147, %p148
      %p150 = scmp.ne.s32.totalorder %s138, %s139
      %p151 = scmp.eq.s32.totalorder %s24, 1
      %p152 = por %p150, %p151
      %p154 = scmp.ne.s32.totalorder %s139, %s153
      %p155 = scmp.eq.s32.totalorder %s24, 0
      %p156 = por %p154, %p155
      %s158 = sadd.s32 %s157, 1
      %p161 = scmp.eq.s32.totalorder %s18, 1
      %p162 = scmp.ne.s32.totalorder %s157, %s159
      %p163 = scmp.eq.s32.totalorder %s18, 0
      %p164 = por %p162, %p163
      %p165 = scmp.ne.s32.totalorder %s157, %s159
      %p166 = scmp.eq.s32.totalorder %s23, 1
      %p167 = por %p165, %p166
      %p168 = scmp.ne.s32.totalorder %s159, %s160
      %p169 = scmp.eq.s32.totalorder %s23, 0
      %p170 = por %p168, %p169
      %p171 = scmp.ne.s32.totalorder %s159, %s160
      %p172 = scmp.eq.s32.totalorder %s24, 1
      %p173 = por %p171, %p172
      %p175 = scmp.ne.s32.totalorder %s160, %s174
      %p176 = scmp.eq.s32.totalorder %s24, 0
      %p177 = por %p175, %p176
      %s179 = sadd.s32 %s178, 1
      %p182 = scmp.eq.s32.totalorder %s18, 1
      %p183 = scmp.ne.s32.totalorder %s178, %s180
      %p184 = scmp.eq.s32.totalorder %s18, 0
      %p185 = por %p183, %p184
      %p186 = scmp.ne.s32.totalorder %s178, %s180
      %p187 = scmp.eq.s32.totalorder %s23, 1
      %p188 = por %p186, %p187
      %p189 = scmp.ne.s32.totalorder %s180, %s181
      %p190 = scmp.eq.s32.totalorder %s23, 0
      %p191 = por %p189, %p190
      %p192 = scmp.ne.s32.totalorder %s180, %s181
      %p193 = scmp.eq.s32.totalorder %s24, 1
      %p194 = por %p192, %p193
      %p196 = scmp.ne.s32.totalorder %s181, %s195
      %p197 = scmp.eq.s32.totalorder %s24, 0
      %p198 = por %p196, %p197
      %s200 = sadd.s32 %s199, 1
      %p203 = scmp.eq.s32.totalorder %s18, 1
      %p204 = scmp.ne.s32.totalorder %s199, %s201
      %p205 = scmp.eq.s32.totalorder %s18, 0
      %p206 = por %p204, %p205
      %p207 = scmp.ne.s32.totalorder %s199, %s201
      %p208 = scmp.eq.s32.totalorder %s23, 1
      %p209 = por %p207, %p208
      %p210 = scmp.ne.s32.totalorder %s201, %s202
      %p211 = scmp.eq.s32.totalorder %s23, 0
      %p212 = por %p210, %p211
      %p213 = scmp.ne.s32.totalorder %s201, %s202
      %p214 = scmp.eq.s32.totalorder %s24, 1
      %p215 = por %p213, %p214
      %p217 = scmp.ne.s32.totalorder %s202, %s216
      %p218 = scmp.eq.s32.totalorder %s24, 0
      %p219 = por %p217, %p218
      %s220 = ssub.s32 %s18, %s25
      %p221 = scmp.eq.s32.totalorder %s220, 0
      %s223 = sadd.s32 %s222, 1
      %s224 = scalar_select %p221, %s222, %s223
      %p227 = pneg %p221
      %p228 = scmp.eq.s32.totalorder %s18, 1
      %p229 = por %p227, %p228
      %p230 = scmp.ne.s32.totalorder %s222, %s225
      %p231 = scmp.eq.s32.totalorder %s18, 0
      %p232 = por %p230, %p231
      %p233 = scmp.ne.s32.totalorder %s222, %s225
      %p234 = scmp.eq.s32.totalorder %s23, 1
      %p235 = por %p233, %p234
      %p236 = scmp.ne.s32.totalorder %s225, %s226
      %p237 = scmp.eq.s32.totalorder %s23, 0
      %p238 = por %p236, %p237
      %p239 = scmp.ne.s32.totalorder %s225, %s226
      %p240 = scmp.eq.s32.totalorder %s24, 1
      %p241 = por %p239, %p240
      %p243 = scmp.ne.s32.totalorder %s226, %s242
      %p244 = scmp.eq.s32.totalorder %s24, 0
      %p245 = por %p243, %p244
      %p246 = scmp.le.s32.totalorder 1, %s18
      %p247 = scmp.lt.s32.totalorder %s18, 3
      %p248 = pnand %p246, %p247
      %p249 = pneg %p248
      // Predicated region
      $region9: #{tpu_custom_call.1} parent=5 // pred_check
        _
      $region10: #{tpu_custom_call.1} parent=5 // pred_check_branch
        %251 = sbr.rel (%p248) target = $region12
      $region11: #{tpu_custom_call.1} parent=5 // pred_region
        %s252 = ssub.s32 %s18, 1
        // Predicated region
        $region13: #{tpu_custom_call.1} parent=11 // pred_check
          %p253 = pneg %p65
        $region14: #{tpu_custom_call.1} parent=11 // pred_check_branch
          %255 = sbr.rel (%p253) target = $region16
        $region15: #{tpu_custom_call.1} parent=11 // pred_region
          _
        $region16: #{tpu_custom_call.1} parent=11 // pred_fallthru
          _
        // Predicated region
        $region17: #{tpu_custom_call.1} parent=11 // pred_check
          %p256 = pneg %p86
        $region18: #{tpu_custom_call.1} parent=11 // pred_check_branch
          %258 = sbr.rel (%p256) target = $region20
        $region19: #{tpu_custom_call.1} parent=11 // pred_region
          _
        $region20: #{tpu_custom_call.1} parent=11 // pred_fallthru
          _
        // Predicated region
        $region21: #{tpu_custom_call.1} parent=11 // pred_check
          %p259 = pneg %p107
        $region22: #{tpu_custom_call.1} parent=11 // pred_check_branch
          %261 = sbr.rel (%p259) target = $region24
        $region23: #{tpu_custom_call.1} parent=11 // pred_region
          _
        $region24: #{tpu_custom_call.1} parent=11 // pred_fallthru
          _
        // Predicated region
        $region25: #{tpu_custom_call.1} parent=11 // pred_check
          %p262 = pneg %p128
        $region26: #{tpu_custom_call.1} parent=11 // pred_check_branch
          %264 = sbr.rel (%p262) target = $region28
        $region27: #{tpu_custom_call.1} parent=11 // pred_region
          _
        $region28: #{tpu_custom_call.1} parent=11 // pred_fallthru
          _
        // Predicated region
        $region29: #{tpu_custom_call.1} parent=11 // pred_check
          %p265 = pneg %p149
        $region30: #{tpu_custom_call.1} parent=11 // pred_check_branch
          %267 = sbr.rel (%p265) target = $region32
        $region31: #{tpu_custom_call.1} parent=11 // pred_region
          _
        $region32: #{tpu_custom_call.1} parent=11 // pred_fallthru
          _
        // Predicated region
        $region33: #{tpu_custom_call.1} parent=11 // pred_check
          %p268 = pneg %p170
        $region34: #{tpu_custom_call.1} parent=11 // pred_check_branch
          %270 = sbr.rel (%p268) target = $region36
        $region35: #{tpu_custom_call.1} parent=11 // pred_region
          _
        $region36: #{tpu_custom_call.1} parent=11 // pred_fallthru
          _
        // Predicated region
        $region37: #{tpu_custom_call.1} parent=11 // pred_check
          %p271 = pneg %p191
        $region38: #{tpu_custom_call.1} parent=11 // pred_check_branch
          %273 = sbr.rel (%p271) target = $region40
        $region39: #{tpu_custom_call.1} parent=11 // pred_region
          _
        $region40: #{tpu_custom_call.1} parent=11 // pred_fallthru
          _
        // Predicated region
        $region41: #{tpu_custom_call.1} parent=11 // pred_check
          %p274 = pneg %p212
        $region42: #{tpu_custom_call.1} parent=11 // pred_check_branch
          %276 = sbr.rel (%p274) target = $region44
        $region43: #{tpu_custom_call.1} parent=11 // pred_region
          _
        $region44: #{tpu_custom_call.1} parent=11 // pred_fallthru
          _
      $region12: #{tpu_custom_call.1} parent=5 // pred_fallthru
        _
      %p277 = scmp.lt.s32.totalorder %s18, 2
      // Predicated region
      $region45: #{tpu_custom_call.1} parent=5 // pred_check
        %p278 = pneg %p277
      $region46: #{tpu_custom_call.1} parent=5 // pred_check_branch
        %280 = sbr.rel (%p278) target = $region48
      $region47: #{tpu_custom_call.1} parent=5 // pred_region
        // Predicated region
        $region49: #{tpu_custom_call.1} parent=47 // pred_check
          %p281 = pneg %p38
        $region50: #{tpu_custom_call.1} parent=47 // pred_check_branch
          %283 = sbr.rel (%p281) target = $region52
        $region51: #{tpu_custom_call.1} parent=47 // pred_region
          %s284 = smul.u32 4, %s18
          %p285 = scmp.lt.s32.totalorder %s284, 7
          %s286 = scalar_select %p285, %s284, 7
          %s287 = smul.addr %s286, 4
          %s288 = scalar_lea.vmem %s0, %s287
          %s289 = smul.u32 4, %s18
        $region52: #{tpu_custom_call.1} parent=47 // pred_fallthru
          _
      $region48: #{tpu_custom_call.1} parent=5 // pred_fallthru
        _
      %p290 = scmp.le.s32.totalorder 1, %s18
      %p291 = scmp.lt.s32.totalorder %s18, 3
      %p292 = pnand %p290, %p291
      %p293 = pneg %p292
      // Predicated region
      $region53: #{tpu_custom_call.1} parent=5 // pred_check
        _
      $region54: #{tpu_custom_call.1} parent=5 // pred_check_branch
        %295 = sbr.rel (%p292) target = $region56
      $region55: #{tpu_custom_call.1} parent=5 // pred_region
        %s296 = ssub.s32 %s18, 1
        %s297 = smul.u32 4, %s23
        %p298 = scmp.lt.s32.totalorder %s297, 7
        %s299 = scalar_select %p298, %s297, 7
        %s300 = smul.addr %s299, 4
        %s301 = scalar_lea.vmem %s0, %s300
        %p302 = pneg %p44
        %p303 = pneg %p41
        %p304 = pneg %p65
        %p305 = pneg %p62
        %p306 = pneg %p86
        %p307 = pneg %p83
        %p308 = pneg %p107
        %p309 = pneg %p104
        %p310 = pneg %p128
        %p311 = pneg %p125
        %p312 = pneg %p149
        %p313 = pneg %p146
        %p314 = pneg %p170
        %p315 = pneg %p167
        %p316 = pneg %p191
        %p317 = pneg %p188
        %p318 = pneg %p212
        %p319 = pneg %p209
        %p320 = pneg %p238
        %p321 = pneg %p235
        %s322 = sand.u32 %s225, 1
        %s323 = scalar_lea.sflag [#allocation3], %s322
        %s324 = sand.u32 %s225, 1
        %s325 = smul.addr %s324, 8
        %s326 = scalar_lea.vmem [#allocation2], %s325
        %s327 = smul.u32 4, %s23
        %p328 = scmp.lt.s32.totalorder %s327, 7
        %s329 = scalar_select %p328, %s327, 7
        %s330 = smul.addr %s329, 4
        %s331 = scalar_lea.vmem %s0, %s330
        %s332 = smul.u32 4, %s23
        %s333 = smul.u32 4, %s23
        %v334 = vld [vmem:[%s1] sm:$0xff]
        %v335 = vld [vmem:[%s1 + $0x8] sm:$0xff]
        %v336 = vld [vmem:[%s1 + $0x10] sm:$0xff]
        %v337 = vld [vmem:[%s1 + $0x18] sm:$0xff]
        %v338 = vld [vmem:[%s2] sm:$0xff]
        %v339 = vld [vmem:[%s2 + $0x8] sm:$0xff]
        %v340 = vld [vmem:[%s2 + $0x10] sm:$0xff]
        %v341 = vld [vmem:[%s2 + $0x18] sm:$0xff]
        %v342 = vld [vmem:[%s331] ss:$4 sm:$0xf]
        %344 = vset.pattern.permute.xlu0 0
        %345 = vperm.xlu0 %344, %v334
        %v346 = vpop.permute.xlu0 %345
        %349 = vset.pattern.permute.xlu0 0
        %350 = vperm.xlu0 %349, %v335
        %v351 = vpop.permute.xlu0 %350
        %354 = vset.pattern.permute.xlu0 0
        %355 = vperm.xlu0 %354, %v336
        %v356 = vpop.permute.xlu0 %355
        %359 = vset.pattern.permute.xlu0 0
        %360 = vperm.xlu0 %359, %v337
        %v361 = vpop.permute.xlu0 %360
        %v364 = vlaneseq
        %v365 = vshrl.u32 %v364, 7
        %v366 = vsub.s32 0, %v365
        %v367 = vrot.slane %v342, %v366
        %v368 = vlaneseq
        %v369 = vshrl.u32 %v368, 7
        %v370 = vsub.s32 1, %v369
        %v371 = vrot.slane %v342, %v370
        %v372 = vlaneseq
        %v373 = vshrl.u32 %v372, 7
        %v374 = vsub.s32 2, %v373
        %v375 = vrot.slane %v342, %v374
        %v376 = vlaneseq
        %v377 = vshrl.u32 %v376, 7
        %v378 = vsub.s32 3, %v377
        %v379 = vrot.slane %v342, %v378
        %v384 = vmul.f32 %v346, %v367
        %v385 = vmul.f32 %v346, %v371
        %v386 = vmul.f32 %v346, %v375
        %v387 = vmul.f32 %v346, %v379
        %v388 = vmul.f32 %v351, %v367
        %v389 = vmul.f32 %v351, %v371
        %v390 = vmul.f32 %v351, %v375
        %v391 = vmul.f32 %v351, %v379
        %v392 = vmul.f32 %v356, %v367
        %v393 = vmul.f32 %v356, %v371
        %v394 = vmul.f32 %v356, %v375
        %v395 = vmul.f32 %v356, %v379
        %v396 = vmul.f32 %v361, %v367
        %v397 = vmul.f32 %v361, %v371
        %v398 = vmul.f32 %v361, %v375
        %v399 = vmul.f32 %v361, %v379
        %401 = vset.pattern.permute.xlu0 0
        %402 = vperm.xlu0 %401, %v338
        %v403 = vpop.permute.xlu0 %402
        %406 = vset.pattern.permute.xlu0 0
        %407 = vperm.xlu0 %406, %v339
        %v408 = vpop.permute.xlu0 %407
        %411 = vset.pattern.permute.xlu0 0
        %412 = vperm.xlu0 %411, %v340
        %v413 = vpop.permute.xlu0 %412
        %416 = vset.pattern.permute.xlu0 0
        %417 = vperm.xlu0 %416, %v341
        %v418 = vpop.permute.xlu0 %417
        %v420 = vadd.f32 %v403, %v384
        %v421 = vadd.f32 %v403, %v385
        %v422 = vadd.f32 %v403, %v386
        %v423 = vadd.f32 %v403, %v387
        %v424 = vadd.f32 %v408, %v388
        %v425 = vadd.f32 %v408, %v389
        %v426 = vadd.f32 %v408, %v390
        %v427 = vadd.f32 %v408, %v391
        %v428 = vadd.f32 %v413, %v392
        %v429 = vadd.f32 %v413, %v393
        %v430 = vadd.f32 %v413, %v394
        %v431 = vadd.f32 %v413, %v395
        %v432 = vadd.f32 %v418, %v396
        %v433 = vadd.f32 %v418, %v397
        %v434 = vadd.f32 %v418, %v398
        %v435 = vadd.f32 %v418, %v399
        %s436 = scalar_lea.vmem %s331, 1
        %v437 = vld [vmem:[%s436] ss:$4 sm:$0xf]
        %438 = vset.pattern.permute.xlu0 1
        %439 = vperm.xlu0 %438, %v334
        %v440 = vpop.permute.xlu0 %439
        %442 = vset.pattern.permute.xlu0 1
        %443 = vperm.xlu0 %442, %v335
        %v444 = vpop.permute.xlu0 %443
        %446 = vset.pattern.permute.xlu0 1
        %447 = vperm.xlu0 %446, %v336
        %v448 = vpop.permute.xlu0 %447
        %450 = vset.pattern.permute.xlu0 1
        %451 = vperm.xlu0 %450, %v337
        %v452 = vpop.permute.xlu0 %451
        %v455 = vlaneseq
        %v456 = vshrl.u32 %v455, 7
        %v457 = vsub.s32 0, %v456
        %v458 = vrot.slane %v437, %v457
        %v459 = vlaneseq
        %v460 = vshrl.u32 %v459, 7
        %v461 = vsub.s32 1, %v460
        %v462 = vrot.slane %v437, %v461
        %v463 = vlaneseq
        %v464 = vshrl.u32 %v463, 7
        %v465 = vsub.s32 2, %v464
        %v466 = vrot.slane %v437, %v465
        %v467 = vlaneseq
        %v468 = vshrl.u32 %v467, 7
        %v469 = vsub.s32 3, %v468
        %v470 = vrot.slane %v437, %v469
        %v475 = vmul.f32 %v440, %v458
        %v476 = vmul.f32 %v440, %v462
        %v477 = vmul.f32 %v440, %v466
        %v478 = vmul.f32 %v440, %v470
        %v479 = vmul.f32 %v444, %v458
        %v480 = vmul.f32 %v444, %v462
        %v481 = vmul.f32 %v444, %v466
        %v482 = vmul.f32 %v444, %v470
        %v483 = vmul.f32 %v448, %v458
        %v484 = vmul.f32 %v448, %v462
        %v485 = vmul.f32 %v448, %v466
        %v486 = vmul.f32 %v448, %v470
        %v487 = vmul.f32 %v452, %v458
        %v488 = vmul.f32 %v452, %v462
        %v489 = vmul.f32 %v452, %v466
        %v490 = vmul.f32 %v452, %v470
        %v491 = vadd.f32 %v420, %v475
        %v492 = vadd.f32 %v421, %v476
        %v493 = vadd.f32 %v422, %v477
        %v494 = vadd.f32 %v423, %v478
        %v495 = vadd.f32 %v424, %v479
        %v496 = vadd.f32 %v425, %v480
        %v497 = vadd.f32 %v426, %v481
        %v498 = vadd.f32 %v427, %v482
        %v499 = vadd.f32 %v428, %v483
        %v500 = vadd.f32 %v429, %v484
        %v501 = vadd.f32 %v430, %v485
        %v502 = vadd.f32 %v431, %v486
        %v503 = vadd.f32 %v432, %v487
        %v504 = vadd.f32 %v433, %v488
        %v505 = vadd.f32 %v434, %v489
        %v506 = vadd.f32 %v435, %v490
        %s507 = scalar_lea.vmem %s331, 2
        %v508 = vld [vmem:[%s507] ss:$4 sm:$0xf]
        %509 = vset.pattern.permute.xlu0 2
        %510 = vperm.xlu0 %509, %v334
        %v511 = vpop.permute.xlu0 %510
        %513 = vset.pattern.permute.xlu0 2
        %514 = vperm.xlu0 %513, %v335
        %v515 = vpop.permute.xlu0 %514
        %517 = vset.pattern.permute.xlu0 2
        %518 = vperm.xlu0 %517, %v336
        %v519 = vpop.permute.xlu0 %518
        %521 = vset.pattern.permute.xlu0 2
        %522 = vperm.xlu0 %521, %v337
        %v523 = vpop.permute.xlu0 %522
        %v526 = vlaneseq
        %v527 = vshrl.u32 %v526, 7
        %v528 = vsub.s32 0, %v527
        %v529 = vrot.slane %v508, %v528
        %v530 = vlaneseq
        %v531 = vshrl.u32 %v530, 7
        %v532 = vsub.s32 1, %v531
        %v533 = vrot.slane %v508, %v532
        %v534 = vlaneseq
        %v535 = vshrl.u32 %v534, 7
        %v536 = vsub.s32 2, %v535
        %v537 = vrot.slane %v508, %v536
        %v538 = vlaneseq
        %v539 = vshrl.u32 %v538, 7
        %v540 = vsub.s32 3, %v539
        %v541 = vrot.slane %v508, %v540
        %v546 = vmul.f32 %v511, %v529
        %v547 = vmul.f32 %v511, %v533
        %v548 = vmul.f32 %v511, %v537
        %v549 = vmul.f32 %v511, %v541
        %v550 = vmul.f32 %v515, %v529
        %v551 = vmul.f32 %v515, %v533
        %v552 = vmul.f32 %v515, %v537
        %v553 = vmul.f32 %v515, %v541
        %v554 = vmul.f32 %v519, %v529
        %v555 = vmul.f32 %v519, %v533
        %v556 = vmul.f32 %v519, %v537
        %v557 = vmul.f32 %v519, %v541
        %v558 = vmul.f32 %v523, %v529
        %v559 = vmul.f32 %v523, %v533
        %v560 = vmul.f32 %v523, %v537
        %v561 = vmul.f32 %v523, %v541
        %v562 = vadd.f32 %v491, %v546
        %v563 = vadd.f32 %v492, %v547
        %v564 = vadd.f32 %v493, %v548
        %v565 = vadd.f32 %v494, %v549
        %v566 = vadd.f32 %v495, %v550
        %v567 = vadd.f32 %v496, %v551
        %v568 = vadd.f32 %v497, %v552
        %v569 = vadd.f32 %v498, %v553
        %v570 = vadd.f32 %v499, %v554
        %v571 = vadd.f32 %v500, %v555
        %v572 = vadd.f32 %v501, %v556
        %v573 = vadd.f32 %v502, %v557
        %v574 = vadd.f32 %v503, %v558
        %v575 = vadd.f32 %v504, %v559
        %v576 = vadd.f32 %v505, %v560
        %v577 = vadd.f32 %v506, %v561
        %v578 = vtanh.pop %v562
        %v579 = vtanh.pop %v563
        %v580 = vtanh.pop %v564
        %v581 = vtanh.pop %v565
        %v582 = vtanh.pop %v566
        %v583 = vtanh.pop %v567
        %v584 = vtanh.pop %v568
        %v585 = vtanh.pop %v569
        %v586 = vtanh.pop %v570
        %v587 = vtanh.pop %v571
        %v588 = vtanh.pop %v572
        %v589 = vtanh.pop %v573
        %v590 = vtanh.pop %v574
        %v591 = vtanh.pop %v575
        %v592 = vtanh.pop %v576
        %v593 = vtanh.pop %v577
        %v594 = vld [vmem:[%s3] sm:$0xff]
        %v595 = vld [vmem:[%s3 + $0x8] sm:$0xff]
        %v596 = vld [vmem:[%s3 + $0x10] sm:$0xff]
        %v597 = vld [vmem:[%s3 + $0x18] sm:$0xff]
        %v598 = vld [vmem:[%s4] sm:$0xff]
        %v599 = vld [vmem:[%s4 + $0x8] sm:$0xff]
        %v600 = vld [vmem:[%s4 + $0x10] sm:$0xff]
        %v601 = vld [vmem:[%s4 + $0x18] sm:$0xff]
        %603 = vset.pattern.permute.xlu0 0
        %604 = vperm.xlu0 %603, %v598
        %v605 = vpop.permute.xlu0 %604
        %608 = vset.pattern.permute.xlu0 0
        %609 = vperm.xlu0 %608, %v599
        %v610 = vpop.permute.xlu0 %609
        %613 = vset.pattern.permute.xlu0 0
        %614 = vperm.xlu0 %613, %v600
        %v615 = vpop.permute.xlu0 %614
        %618 = vset.pattern.permute.xlu0 0
        %619 = vperm.xlu0 %618, %v601
        %v620 = vpop.permute.xlu0 %619
        %vm622 = vcmask 261120
        %v624 = vsel %vm622, %v594, 0
        %v627 = vsel %vm622, %v595, 0
        %v630 = vsel %vm622, %v596, 0
        %v633 = vsel %vm622, %v597, 0
        %635 = vmatprep.subr.mxu0 0.0
        %636 = vmatpush1.msra.mxu0 0.0
        %637 = vmatprep.subr.mxu0 0.0
        %638 = vmatpush1.msra.mxu0 0.0
        %639 = vmatprep.subr.mxu0 0.0
        %640 = vmatpush1.msra.mxu0 0.0
        %641 = vmatprep.subr.mxu0 0.0
        %642 = vmatpush1.msra.mxu0 0.0
        %643 = vmatprep.subr.mxu0 0.0
        %644 = vmatpush1.msra.mxu0 0.0
        %645 = vmatprep.subr.mxu0 0.0
        %646 = vmatpush1.msra.mxu0 0.0
        %647 = vmatprep.subr.mxu0 0.0
        %648 = vmatpush1.msra.mxu0 0.0
        %649 = vmatprep.subr.mxu0 0.0
        %650 = vmatpush1.msra.mxu0 0.0
        %651 = vmatprep.subr.mxu0 0.0
        %652 = vmatpush1.msra.mxu0 0.0
        %653 = vmatprep.subr.mxu0 0.0
        %654 = vmatpush1.msra.mxu0 0.0
        %655 = vmatprep.subr.mxu0 0.0
        %656 = vmatpush1.msra.mxu0 0.0
        %657 = vmatprep.subr.mxu0 0.0
        %658 = vmatpush1.msra.mxu0 0.0
        %659 = vmatprep.subr.mxu0 %v591
        %660 = vmatpush1.msra.mxu0 %v590
        %661 = vmatprep.subr.mxu0 %v587
        %662 = vmatpush1.msra.mxu0 %v586
        %663 = vmatprep.subr.mxu0 %v583
        %664 = vmatpush1.msra.mxu0 %v582
        %665 = vmatprep.subr.mxu0 %v579
        %666 = vmatpush1.msra.mxu0 %v578
        %667 = vmatprep.subr.mxu0 0.0
        %668 = vmatpush2.msra.mxu0 0.0
        %669 = vmatprep.subr.mxu0 0.0
        %670 = vmatpush2.msra.mxu0 0.0
        %671 = vmatprep.subr.mxu0 0.0
        %672 = vmatpush2.msra.mxu0 0.0
        %673 = vmatprep.subr.mxu0 0.0
        %674 = vmatpush2.msra.mxu0 0.0
        %675 = vmatprep.subr.mxu0 0.0
        %676 = vmatpush2.msra.mxu0 0.0
        %677 = vmatprep.subr.mxu0 0.0
        %678 = vmatpush2.msra.mxu0 0.0
        %679 = vmatprep.subr.mxu0 0.0
        %680 = vmatpush2.msra.mxu0 0.0
        %681 = vmatprep.subr.mxu0 0.0
        %682 = vmatpush2.msra.mxu0 0.0
        %683 = vmatprep.subr.mxu0 0.0
        %684 = vmatpush2.msra.mxu0 0.0
        %685 = vmatprep.subr.mxu0 0.0
        %686 = vmatpush2.msra.mxu0 0.0
        %687 = vmatprep.subr.mxu0 0.0
        %688 = vmatpush2.msra.mxu0 0.0
        %689 = vmatprep.subr.mxu0 0.0
        %690 = vmatpush2.msra.mxu0 0.0
        %691 = vmatprep.subr.mxu0 0.0
        %692 = vmatpush2.msra.mxu0 0.0
        %693 = vmatprep.subr.mxu0 0.0
        %694 = vmatpush2.msra.mxu0 0.0
        %695 = vmatprep.subr.mxu0 0.0
        %696 = vmatpush2.msra.mxu0 0.0
        %697 = vmatprep.subr.mxu0 0.0
        %698 = vmatpush2.msra.mxu0 0.0
        %699 = vmatprep.mubr.f32.mxu0 0.0
        %700 = vmatmul.mubr.f32.gmra.mxu0 %v624
        %v701 = vpop.f32.mrf.mxu0
        %v702 = vadd.f32 %v605, %v701
        %v703 = vpop.f32.mrf.mxu0
        %v704 = vadd.f32 %v605, %v703
        %705 = vmatprep.mubr.f32.mxu0 0.0
        %706 = vmatmul.mubr.f32.gmra.mxu0 %v627
        %v707 = vpop.f32.mrf.mxu0
        %v708 = vadd.f32 %v610, %v707
        %v709 = vpop.f32.mrf.mxu0
        %v710 = vadd.f32 %v610, %v709
        %711 = vmatprep.mubr.f32.mxu0 0.0
        %712 = vmatmul.mubr.f32.gmra.mxu0 %v630
        %v713 = vpop.f32.mrf.mxu0
        %v714 = vadd.f32 %v615, %v713
        %v715 = vpop.f32.mrf.mxu0
        %v716 = vadd.f32 %v615, %v715
        %717 = vmatprep.mubr.f32.mxu0 0.0
        %718 = vmatmul.mubr.f32.gmra.mxu0 %v633
        %v719 = vpop.f32.mrf.mxu0
        %v720 = vadd.f32 %v620, %v719
        %v721 = vpop.f32.mrf.mxu0
        %v722 = vadd.f32 %v620, %v721
        %723 = vdwg.mxu0
        %724 = vmatprep.subr.mxu0 0.0
        %725 = vmatpush1.msra.mxu0 0.0
        %726 = vmatprep.subr.mxu0 0.0
        %727 = vmatpush1.msra.mxu0 0.0
        %728 = vmatprep.subr.mxu0 0.0
        %729 = vmatpush1.msra.mxu0 0.0
        %730 = vmatprep.subr.mxu0 0.0
        %731 = vmatpush1.msra.mxu0 0.0
        %732 = vmatprep.subr.mxu0 0.0
        %733 = vmatpush1.msra.mxu0 0.0
        %734 = vmatprep.subr.mxu0 0.0
        %735 = vmatpush1.msra.mxu0 0.0
        %736 = vmatprep.subr.mxu0 0.0
        %737 = vmatpush1.msra.mxu0 0.0
        %738 = vmatprep.subr.mxu0 0.0
        %739 = vmatpush1.msra.mxu0 0.0
        %740 = vmatprep.subr.mxu0 0.0
        %741 = vmatpush1.msra.mxu0 0.0
        %742 = vmatprep.subr.mxu0 0.0
        %743 = vmatpush1.msra.mxu0 0.0
        %744 = vmatprep.subr.mxu0 0.0
        %745 = vmatpush1.msra.mxu0 0.0
        %746 = vmatprep.subr.mxu0 0.0
        %747 = vmatpush1.msra.mxu0 0.0
        %748 = vmatprep.subr.mxu0 %v593
        %749 = vmatpush1.msra.mxu0 %v592
        %750 = vmatprep.subr.mxu0 %v589
        %751 = vmatpush1.msra.mxu0 %v588
        %752 = vmatprep.subr.mxu0 %v585
        %753 = vmatpush1.msra.mxu0 %v584
        %754 = vmatprep.subr.mxu0 %v581
        %755 = vmatpush1.msra.mxu0 %v580
        %756 = vmatprep.subr.mxu0 0.0
        %757 = vmatpush2.msra.mxu0 0.0
        %758 = vmatprep.subr.mxu0 0.0
        %759 = vmatpush2.msra.mxu0 0.0
        %760 = vmatprep.subr.mxu0 0.0
        %761 = vmatpush2.msra.mxu0 0.0
        %762 = vmatprep.subr.mxu0 0.0
        %763 = vmatpush2.msra.mxu0 0.0
        %764 = vmatprep.subr.mxu0 0.0
        %765 = vmatpush2.msra.mxu0 0.0
        %766 = vmatprep.subr.mxu0 0.0
        %767 = vmatpush2.msra.mxu0 0.0
        %768 = vmatprep.subr.mxu0 0.0
        %769 = vmatpush2.msra.mxu0 0.0
        %770 = vmatprep.subr.mxu0 0.0
        %771 = vmatpush2.msra.mxu0 0.0
        %772 = vmatprep.subr.mxu0 0.0
        %773 = vmatpush2.msra.mxu0 0.0
        %774 = vmatprep.subr.mxu0 0.0
        %775 = vmatpush2.msra.mxu0 0.0
        %776 = vmatprep.subr.mxu0 0.0
        %777 = vmatpush2.msra.mxu0 0.0
        %778 = vmatprep.subr.mxu0 0.0
        %779 = vmatpush2.msra.mxu0 0.0
        %780 = vmatprep.subr.mxu0 0.0
        %781 = vmatpush2.msra.mxu0 0.0
        %782 = vmatprep.subr.mxu0 0.0
        %783 = vmatpush2.msra.mxu0 0.0
        %784 = vmatprep.subr.mxu0 0.0
        %785 = vmatpush2.msra.mxu0 0.0
        %786 = vmatprep.subr.mxu0 0.0
        %787 = vmatpush2.msra.mxu0 0.0
        %788 = vmatprep.mubr.f32.mxu0 0.0
        %789 = vmatmul.mubr.f32.gmra.mxu0 %v624
        %v790 = vpop.f32.mrf.mxu0
        %v791 = vadd.f32 %v605, %v790
        %v792 = vpop.f32.mrf.mxu0
        %v793 = vadd.f32 %v605, %v792
        %794 = vmatprep.mubr.f32.mxu0 0.0
        %795 = vmatmul.mubr.f32.gmra.mxu0 %v627
        %v796 = vpop.f32.mrf.mxu0
        %v797 = vadd.f32 %v610, %v796
        %v798 = vpop.f32.mrf.mxu0
        %v799 = vadd.f32 %v610, %v798
        %800 = vmatprep.mubr.f32.mxu0 0.0
        %801 = vmatmul.mubr.f32.gmra.mxu0 %v630
        %v802 = vpop.f32.mrf.mxu0
        %v803 = vadd.f32 %v615, %v802
        %v804 = vpop.f32.mrf.mxu0
        %v805 = vadd.f32 %v615, %v804
        %806 = vmatprep.mubr.f32.mxu0 0.0
        %807 = vmatmul.mubr.f32.gmra.mxu0 %v633
        %v808 = vpop.f32.mrf.mxu0
        %v809 = vadd.f32 %v620, %v808
        %v810 = vpop.f32.mrf.mxu0
        %v811 = vadd.f32 %v620, %v810
        %812 = vdwg.mxu0
        %v813 = vtanh.pop %v702
        %v814 = vtanh.pop %v704
        %v815 = vtanh.pop %v791
        %v816 = vtanh.pop %v793
        %v817 = vtanh.pop %v708
        %v818 = vtanh.pop %v710
        %v819 = vtanh.pop %v797
        %v820 = vtanh.pop %v799
        %v821 = vtanh.pop %v714
        %v822 = vtanh.pop %v716
        %v823 = vtanh.pop %v803
        %v824 = vtanh.pop %v805
        %v825 = vtanh.pop %v720
        %v826 = vtanh.pop %v722
        %v827 = vtanh.pop %v809
        %v828 = vtanh.pop %v811
        %v829 = vld [vmem:[%s5] sm:$0xff]
        %v830 = vld [vmem:[%s5 + $0x8] sm:$0xff]
        %v831 = vld [vmem:[%s5 + $0x10] sm:$0xff]
        %v832 = vld [vmem:[%s5 + $0x18] sm:$0xff]
        %v833 = vld [vmem:[%s6] sm:$0xff]
        %v834 = vld [vmem:[%s6 + $0x8] sm:$0xff]
        %v835 = vld [vmem:[%s6 + $0x10] sm:$0xff]
        %v836 = vld [vmem:[%s6 + $0x18] sm:$0xff]
        %838 = vset.pattern.permute.xlu0 0
        %839 = vperm.xlu0 %838, %v833
        %v840 = vpop.permute.xlu0 %839
        %843 = vset.pattern.permute.xlu0 0
        %844 = vperm.xlu0 %843, %v834
        %v845 = vpop.permute.xlu0 %844
        %848 = vset.pattern.permute.xlu0 0
        %849 = vperm.xlu0 %848, %v835
        %v850 = vpop.permute.xlu0 %849
        %853 = vset.pattern.permute.xlu0 0
        %854 = vperm.xlu0 %853, %v836
        %v855 = vpop.permute.xlu0 %854
        %v858 = vsel %vm622, %v829, 0
        %v861 = vsel %vm622, %v830, 0
        %v864 = vsel %vm622, %v831, 0
        %v867 = vsel %vm622, %v832, 0
        %869 = vmatprep.subr.mxu0 0.0
        %870 = vmatpush1.msra.mxu0 0.0
        %871 = vmatprep.subr.mxu0 0.0
        %872 = vmatpush1.msra.mxu0 0.0
        %873 = vmatprep.subr.mxu0 0.0
        %874 = vmatpush1.msra.mxu0 0.0
        %875 = vmatprep.subr.mxu0 0.0
        %876 = vmatpush1.msra.mxu0 0.0
        %877 = vmatprep.subr.mxu0 0.0
        %878 = vmatpush1.msra.mxu0 0.0
        %879 = vmatprep.subr.mxu0 0.0
        %880 = vmatpush1.msra.mxu0 0.0
        %881 = vmatprep.subr.mxu0 0.0
        %882 = vmatpush1.msra.mxu0 0.0
        %883 = vmatprep.subr.mxu0 0.0
        %884 = vmatpush1.msra.mxu0 0.0
        %885 = vmatprep.subr.mxu0 0.0
        %886 = vmatpush1.msra.mxu0 0.0
        %887 = vmatprep.subr.mxu0 0.0
        %888 = vmatpush1.msra.mxu0 0.0
        %889 = vmatprep.subr.mxu0 0.0
        %890 = vmatpush1.msra.mxu0 0.0
        %891 = vmatprep.subr.mxu0 0.0
        %892 = vmatpush1.msra.mxu0 0.0
        %893 = vmatprep.subr.mxu0 %v826
        %894 = vmatpush1.msra.mxu0 %v825
        %895 = vmatprep.subr.mxu0 %v822
        %896 = vmatpush1.msra.mxu0 %v821
        %897 = vmatprep.subr.mxu0 %v818
        %898 = vmatpush1.msra.mxu0 %v817
        %899 = vmatprep.subr.mxu0 %v814
        %900 = vmatpush1.msra.mxu0 %v813
        %901 = vmatprep.subr.mxu0 0.0
        %902 = vmatpush2.msra.mxu0 0.0
        %903 = vmatprep.subr.mxu0 0.0
        %904 = vmatpush2.msra.mxu0 0.0
        %905 = vmatprep.subr.mxu0 0.0
        %906 = vmatpush2.msra.mxu0 0.0
        %907 = vmatprep.subr.mxu0 0.0
        %908 = vmatpush2.msra.mxu0 0.0
        %909 = vmatprep.subr.mxu0 0.0
        %910 = vmatpush2.msra.mxu0 0.0
        %911 = vmatprep.subr.mxu0 0.0
        %912 = vmatpush2.msra.mxu0 0.0
        %913 = vmatprep.subr.mxu0 0.0
        %914 = vmatpush2.msra.mxu0 0.0
        %915 = vmatprep.subr.mxu0 0.0
        %916 = vmatpush2.msra.mxu0 0.0
        %917 = vmatprep.subr.mxu0 0.0
        %918 = vmatpush2.msra.mxu0 0.0
        %919 = vmatprep.subr.mxu0 0.0
        %920 = vmatpush2.msra.mxu0 0.0
        %921 = vmatprep.subr.mxu0 0.0
        %922 = vmatpush2.msra.mxu0 0.0
        %923 = vmatprep.subr.mxu0 0.0
        %924 = vmatpush2.msra.mxu0 0.0
        %925 = vmatprep.subr.mxu0 0.0
        %926 = vmatpush2.msra.mxu0 0.0
        %927 = vmatprep.subr.mxu0 0.0
        %928 = vmatpush2.msra.mxu0 0.0
        %929 = vmatprep.subr.mxu0 0.0
        %930 = vmatpush2.msra.mxu0 0.0
        %931 = vmatprep.subr.mxu0 0.0
        %932 = vmatpush2.msra.mxu0 0.0
        %933 = vmatprep.mubr.f32.mxu0 0.0
        %934 = vmatmul.mubr.f32.gmra.mxu0 %v858
        %v935 = vpop.f32.mrf.mxu0
        %v936 = vadd.f32 %v840, %v935
        %v937 = vpop.f32.mrf.mxu0
        %v938 = vadd.f32 %v840, %v937
        %939 = vmatprep.mubr.f32.mxu0 0.0
        %940 = vmatmul.mubr.f32.gmra.mxu0 %v861
        %v941 = vpop.f32.mrf.mxu0
        %v942 = vadd.f32 %v845, %v941
        %v943 = vpop.f32.mrf.mxu0
        %v944 = vadd.f32 %v845, %v943
        %945 = vmatprep.mubr.f32.mxu0 0.0
        %946 = vmatmul.mubr.f32.gmra.mxu0 %v864
        %v947 = vpop.f32.mrf.mxu0
        %v948 = vadd.f32 %v850, %v947
        %v949 = vpop.f32.mrf.mxu0
        %v950 = vadd.f32 %v850, %v949
        %951 = vmatprep.mubr.f32.mxu0 0.0
        %952 = vmatmul.mubr.f32.gmra.mxu0 %v867
        %v953 = vpop.f32.mrf.mxu0
        %v954 = vadd.f32 %v855, %v953
        %v955 = vpop.f32.mrf.mxu0
        %v956 = vadd.f32 %v855, %v955
        %957 = vdwg.mxu0
        %958 = vmatprep.subr.mxu0 0.0
        %959 = vmatpush1.msra.mxu0 0.0
        %960 = vmatprep.subr.mxu0 0.0
        %961 = vmatpush1.msra.mxu0 0.0
        %962 = vmatprep.subr.mxu0 0.0
        %963 = vmatpush1.msra.mxu0 0.0
        %964 = vmatprep.subr.mxu0 0.0
        %965 = vmatpush1.msra.mxu0 0.0
        %966 = vmatprep.subr.mxu0 0.0
        %967 = vmatpush1.msra.mxu0 0.0
        %968 = vmatprep.subr.mxu0 0.0
        %969 = vmatpush1.msra.mxu0 0.0
        %970 = vmatprep.subr.mxu0 0.0
        %971 = vmatpush1.msra.mxu0 0.0
        %972 = vmatprep.subr.mxu0 0.0
        %973 = vmatpush1.msra.mxu0 0.0
        %974 = vmatprep.subr.mxu0 0.0
        %975 = vmatpush1.msra.mxu0 0.0
        %976 = vmatprep.subr.mxu0 0.0
        %977 = vmatpush1.msra.mxu0 0.0
        %978 = vmatprep.subr.mxu0 0.0
        %979 = vmatpush1.msra.mxu0 0.0
        %980 = vmatprep.subr.mxu0 0.0
        %981 = vmatpush1.msra.mxu0 0.0
        %982 = vmatprep.subr.mxu0 %v828
        %983 = vmatpush1.msra.mxu0 %v827
        %984 = vmatprep.subr.mxu0 %v824
        %985 = vmatpush1.msra.mxu0 %v823
        %986 = vmatprep.subr.mxu0 %v820
        %987 = vmatpush1.msra.mxu0 %v819
        %988 = vmatprep.subr.mxu0 %v816
        %989 = vmatpush1.msra.mxu0 %v815
        %990 = vmatprep.subr.mxu0 0.0
        %991 = vmatpush2.msra.mxu0 0.0
        %992 = vmatprep.subr.mxu0 0.0
        %993 = vmatpush2.msra.mxu0 0.0
        %994 = vmatprep.subr.mxu0 0.0
        %995 = vmatpush2.msra.mxu0 0.0
        %996 = vmatprep.subr.mxu0 0.0
        %997 = vmatpush2.msra.mxu0 0.0
        %998 = vmatprep.subr.mxu0 0.0
        %999 = vmatpush2.msra.mxu0 0.0
        %1000 = vmatprep.subr.mxu0 0.0
        %1001 = vmatpush2.msra.mxu0 0.0
        %1002 = vmatprep.subr.mxu0 0.0
        %1003 = vmatpush2.msra.mxu0 0.0
        %1004 = vmatprep.subr.mxu0 0.0
        %1005 = vmatpush2.msra.mxu0 0.0
        %1006 = vmatprep.subr.mxu0 0.0
        %1007 = vmatpush2.msra.mxu0 0.0
        %1008 = vmatprep.subr.mxu0 0.0
        %1009 = vmatpush2.msra.mxu0 0.0
        %1010 = vmatprep.subr.mxu0 0.0
        %1011 = vmatpush2.msra.mxu0 0.0
        %1012 = vmatprep.subr.mxu0 0.0
        %1013 = vmatpush2.msra.mxu0 0.0
        %1014 = vmatprep.subr.mxu0 0.0
        %1015 = vmatpush2.msra.mxu0 0.0
        %1016 = vmatprep.subr.mxu0 0.0
        %1017 = vmatpush2.msra.mxu0 0.0
        %1018 = vmatprep.subr.mxu0 0.0
        %1019 = vmatpush2.msra.mxu0 0.0
        %1020 = vmatprep.subr.mxu0 0.0
        %1021 = vmatpush2.msra.mxu0 0.0
        %1022 = vmatprep.mubr.f32.mxu0 0.0
        %1023 = vmatmul.mubr.f32.gmra.mxu0 %v858
        %v1024 = vpop.f32.mrf.mxu0
        %v1025 = vadd.f32 %v840, %v1024
        %v1026 = vpop.f32.mrf.mxu0
        %v1027 = vadd.f32 %v840, %v1026
        %1028 = vmatprep.mubr.f32.mxu0 0.0
        %1029 = vmatmul.mubr.f32.gmra.mxu0 %v861
        %v1030 = vpop.f32.mrf.mxu0
        %v1031 = vadd.f32 %v845, %v1030
        %v1032 = vpop.f32.mrf.mxu0
        %v1033 = vadd.f32 %v845, %v1032
        %1034 = vmatprep.mubr.f32.mxu0 0.0
        %1035 = vmatmul.mubr.f32.gmra.mxu0 %v864
        %v1036 = vpop.f32.mrf.mxu0
        %v1037 = vadd.f32 %v850, %v1036
        %v1038 = vpop.f32.mrf.mxu0
        %v1039 = vadd.f32 %v850, %v1038
        %1040 = vmatprep.mubr.f32.mxu0 0.0
        %1041 = vmatmul.mubr.f32.gmra.mxu0 %v867
        %v1042 = vpop.f32.mrf.mxu0
        %v1043 = vadd.f32 %v855, %v1042
        %v1044 = vpop.f32.mrf.mxu0
        %v1045 = vadd.f32 %v855, %v1044
        %1046 = vdwg.mxu0
        %v1047 = vtanh.pop %v936
        %v1048 = vtanh.pop %v938
        %v1049 = vtanh.pop %v1025
        %v1050 = vtanh.pop %v1027
        %v1051 = vtanh.pop %v942
        %v1052 = vtanh.pop %v944
        %v1053 = vtanh.pop %v1031
        %v1054 = vtanh.pop %v1033
        %v1055 = vtanh.pop %v948
        %v1056 = vtanh.pop %v950
        %v1057 = vtanh.pop %v1037
        %v1058 = vtanh.pop %v1039
        %v1059 = vtanh.pop %v954
        %v1060 = vtanh.pop %v956
        %v1061 = vtanh.pop %v1043
        %v1062 = vtanh.pop %v1045
        %v1063 = vld [vmem:[%s7] sm:$0x3]
        %v1064 = vld [vmem:[%s8] sm:$0x3]
        %1066 = vset.pattern.permute.xlu0 0
        %1067 = vperm.xlu0 %1066, %v1064
        %v1068 = vpop.permute.xlu0 %1067
        %v1071 = vsel %vm622, %v1063, 0
        %1073 = vmatprep.subr.mxu0 0.0
        %1074 = vmatpush1.msra.mxu0 0.0
        %1075 = vmatprep.subr.mxu0 0.0
        %1076 = vmatpush1.msra.mxu0 0.0
        %1077 = vmatprep.subr.mxu0 0.0
        %1078 = vmatpush1.msra.mxu0 0.0
        %1079 = vmatprep.subr.mxu0 0.0
        %1080 = vmatpush1.msra.mxu0 0.0
        %1081 = vmatprep.subr.mxu0 0.0
        %1082 = vmatpush1.msra.mxu0 0.0
        %1083 = vmatprep.subr.mxu0 0.0
        %1084 = vmatpush1.msra.mxu0 0.0
        %1085 = vmatprep.subr.mxu0 0.0
        %1086 = vmatpush1.msra.mxu0 0.0
        %1087 = vmatprep.subr.mxu0 0.0
        %1088 = vmatpush1.msra.mxu0 0.0
        %1089 = vmatprep.subr.mxu0 0.0
        %1090 = vmatpush1.msra.mxu0 0.0
        %1091 = vmatprep.subr.mxu0 0.0
        %1092 = vmatpush1.msra.mxu0 0.0
        %1093 = vmatprep.subr.mxu0 0.0
        %1094 = vmatpush1.msra.mxu0 0.0
        %1095 = vmatprep.subr.mxu0 0.0
        %1096 = vmatpush1.msra.mxu0 0.0
        %1097 = vmatprep.subr.mxu0 %v1060
        %1098 = vmatpush1.msra.mxu0 %v1059
        %1099 = vmatprep.subr.mxu0 %v1056
        %1100 = vmatpush1.msra.mxu0 %v1055
        %1101 = vmatprep.subr.mxu0 %v1052
        %1102 = vmatpush1.msra.mxu0 %v1051
        %1103 = vmatprep.subr.mxu0 %v1048
        %1104 = vmatpush1.msra.mxu0 %v1047
        %1105 = vmatprep.subr.mxu0 0.0
        %1106 = vmatpush2.msra.mxu0 0.0
        %1107 = vmatprep.subr.mxu0 0.0
        %1108 = vmatpush2.msra.mxu0 0.0
        %1109 = vmatprep.subr.mxu0 0.0
        %1110 = vmatpush2.msra.mxu0 0.0
        %1111 = vmatprep.subr.mxu0 0.0
        %1112 = vmatpush2.msra.mxu0 0.0
        %1113 = vmatprep.subr.mxu0 0.0
        %1114 = vmatpush2.msra.mxu0 0.0
        %1115 = vmatprep.subr.mxu0 0.0
        %1116 = vmatpush2.msra.mxu0 0.0
        %1117 = vmatprep.subr.mxu0 0.0
        %1118 = vmatpush2.msra.mxu0 0.0
        %1119 = vmatprep.subr.mxu0 0.0
        %1120 = vmatpush2.msra.mxu0 0.0
        %1121 = vmatprep.subr.mxu0 0.0
        %1122 = vmatpush2.msra.mxu0 0.0
        %1123 = vmatprep.subr.mxu0 0.0
        %1124 = vmatpush2.msra.mxu0 0.0
        %1125 = vmatprep.subr.mxu0 0.0
        %1126 = vmatpush2.msra.mxu0 0.0
        %1127 = vmatprep.subr.mxu0 0.0
        %1128 = vmatpush2.msra.mxu0 0.0
        %1129 = vmatprep.subr.mxu0 0.0
        %1130 = vmatpush2.msra.mxu0 0.0
        %1131 = vmatprep.subr.mxu0 0.0
        %1132 = vmatpush2.msra.mxu0 0.0
        %1133 = vmatprep.subr.mxu0 0.0
        %1134 = vmatpush2.msra.mxu0 0.0
        %1135 = vmatprep.subr.mxu0 0.0
        %1136 = vmatpush2.msra.mxu0 0.0
        %1137 = vmatprep.mubr.f32.mxu0 0.0
        %1138 = vmatmul.mubr.f32.gmra.mxu0 %v1071
        %v1139 = vpop.f32.mrf.mxu0
        %v1140 = vadd.f32 %v1068, %v1139
        %v1141 = vpop.f32.mrf.mxu0
        %v1142 = vadd.f32 %v1068, %v1141
        %1143 = vdwg.mxu0
        %1144 = vmatprep.subr.mxu0 0.0
        %1145 = vmatpush1.msra.mxu0 0.0
        %1146 = vmatprep.subr.mxu0 0.0
        %1147 = vmatpush1.msra.mxu0 0.0
        %1148 = vmatprep.subr.mxu0 0.0
        %1149 = vmatpush1.msra.mxu0 0.0
        %1150 = vmatprep.subr.mxu0 0.0
        %1151 = vmatpush1.msra.mxu0 0.0
        %1152 = vmatprep.subr.mxu0 0.0
        %1153 = vmatpush1.msra.mxu0 0.0
        %1154 = vmatprep.subr.mxu0 0.0
        %1155 = vmatpush1.msra.mxu0 0.0
        %1156 = vmatprep.subr.mxu0 0.0
        %1157 = vmatpush1.msra.mxu0 0.0
        %1158 = vmatprep.subr.mxu0 0.0
        %1159 = vmatpush1.msra.mxu0 0.0
        %1160 = vmatprep.subr.mxu0 0.0
        %1161 = vmatpush1.msra.mxu0 0.0
        %1162 = vmatprep.subr.mxu0 0.0
        %1163 = vmatpush1.msra.mxu0 0.0
        %1164 = vmatprep.subr.mxu0 0.0
        %1165 = vmatpush1.msra.mxu0 0.0
        %1166 = vmatprep.subr.mxu0 0.0
        %1167 = vmatpush1.msra.mxu0 0.0
        %1168 = vmatprep.subr.mxu0 %v1062
        %1169 = vmatpush1.msra.mxu0 %v1061
        %1170 = vmatprep.subr.mxu0 %v1058
        %1171 = vmatpush1.msra.mxu0 %v1057
        %1172 = vmatprep.subr.mxu0 %v1054
        %1173 = vmatpush1.msra.mxu0 %v1053
        %1174 = vmatprep.subr.mxu0 %v1050
        %1175 = vmatpush1.msra.mxu0 %v1049
        %1176 = vmatprep.subr.mxu0 0.0
        %1177 = vmatpush2.msra.mxu0 0.0
        %1178 = vmatprep.subr.mxu0 0.0
        %1179 = vmatpush2.msra.mxu0 0.0
        %1180 = vmatprep.subr.mxu0 0.0
        %1181 = vmatpush2.msra.mxu0 0.0
        %1182 = vmatprep.subr.mxu0 0.0
        %1183 = vmatpush2.msra.mxu0 0.0
        %1184 = vmatprep.subr.mxu0 0.0
        %1185 = vmatpush2.msra.mxu0 0.0
        %1186 = vmatprep.subr.mxu0 0.0
        %1187 = vmatpush2.msra.mxu0 0.0
        %1188 = vmatprep.subr.mxu0 0.0
        %1189 = vmatpush2.msra.mxu0 0.0
        %1190 = vmatprep.subr.mxu0 0.0
        %1191 = vmatpush2.msra.mxu0 0.0
        %1192 = vmatprep.subr.mxu0 0.0
        %1193 = vmatpush2.msra.mxu0 0.0
        %1194 = vmatprep.subr.mxu0 0.0
        %1195 = vmatpush2.msra.mxu0 0.0
        %1196 = vmatprep.subr.mxu0 0.0
        %1197 = vmatpush2.msra.mxu0 0.0
        %1198 = vmatprep.subr.mxu0 0.0
        %1199 = vmatpush2.msra.mxu0 0.0
        %1200 = vmatprep.subr.mxu0 0.0
        %1201 = vmatpush2.msra.mxu0 0.0
        %1202 = vmatprep.subr.mxu0 0.0
        %1203 = vmatpush2.msra.mxu0 0.0
        %1204 = vmatprep.subr.mxu0 0.0
        %1205 = vmatpush2.msra.mxu0 0.0
        %1206 = vmatprep.subr.mxu0 0.0
        %1207 = vmatpush2.msra.mxu0 0.0
        %1208 = vmatprep.mubr.f32.mxu0 0.0
        %1209 = vmatmul.mubr.f32.gmra.mxu0 %v1071
        %v1210 = vpop.f32.mrf.mxu0
        %v1211 = vadd.f32 %v1068, %v1210
        %v1212 = vpop.f32.mrf.mxu0
        %v1213 = vadd.f32 %v1068, %v1212
        %1214 = vdwg.mxu0
        %v1219 = vcombine.low %v1140, %v1142
        %v1220 = vcombine.low %v1211, %v1213
        %v1222 = vunpack.c.l.s4 1983009808
        %v1223 = vunpack.c.0.s8 %v1222
        %v1224 = vlaneseq
        %v1225 = vshrl.u32 %v1224, 7
        %v1226 = vsub.s32 %v1223, %v1225
        %v1227 = vrot.slane %v1219, %v1226
        %v1229 = vunpack.c.l.s4 1983009808
        %v1230 = vunpack.c.0.s8 %v1229
        %v1231 = vlaneseq
        %v1232 = vshrl.u32 %v1231, 7
        %v1233 = vsub.s32 %v1230, %v1232
        %v1234 = vrot.slane %v1220, %v1233
        %v1235 = vcombine.low %v1227, %v1234
        %1237 = vst [vmem:[%s326] sm:$0xff] %v1235
        %s1238 = sand.u32 %s225, 1
        %s1239 = scalar_lea.sflag [#allocation3], %s1238
        %s1240 = sand.u32 %s225, 1
        %s1241 = smul.addr %s1240, 8
        %s1242 = scalar_lea.vmem [#allocation2], %s1241
        // Predicated region
        $region57: #{tpu_custom_call.1} parent=55 // pred_check
          %p1243 = pneg %p235
        $region58: #{tpu_custom_call.1} parent=55 // pred_check_branch
          %1245 = sbr.rel (%p1243) target = $region60
        $region59: #{tpu_custom_call.1} parent=55 // pred_region
          %s1246 = smul.u32 4, %s23
          %s1248 = ssub.s32 128, 128
          %1249 = vsyncadd %s1239, %s1248
          %s1250 = smul.addr %s1246, 32
          %s1251 = scalar_lea.hbm %s9, %s1250
          %s1253 = sshll.u32 %s1242, 4
          %s1254 = int_to_ptr.vmem [resolvable:$true] %s1253
          %1256 = dma.vmem_to_hbm [thread:$0]  %s1254, 128, %s1251, %s1239
        $region60: #{tpu_custom_call.1} parent=55 // pred_fallthru
          _
      $region56: #{tpu_custom_call.1} parent=5 // pred_fallthru
        _
      %p1257 = scmp.le.s32.totalorder 2, %s18
      // Predicated region
      $region61: #{tpu_custom_call.1} parent=5 // pred_check
        %p1258 = pneg %p1257
      $region62: #{tpu_custom_call.1} parent=5 // pred_check_branch
        %1260 = sbr.rel (%p1258) target = $region64
      $region63: #{tpu_custom_call.1} parent=5 // pred_region
        %s1261 = ssub.s32 %s18, 2
        // Predicated region
        $region65: #{tpu_custom_call.1} parent=63 // pred_check
          %p1262 = pneg %p241
        $region66: #{tpu_custom_call.1} parent=63 // pred_check_branch
          %1264 = sbr.rel (%p1262) target = $region68
        $region67: #{tpu_custom_call.1} parent=63 // pred_region
          %s1265 = sand.u32 %s226, 1
          %s1266 = scalar_lea.sflag [#allocation3], %s1265
          %s1267 = sand.u32 %s226, 1
          %s1268 = smul.addr %s1267, 8
          %s1269 = scalar_lea.vmem [#allocation2], %s1268
          %1270 = dma.done %s1266, 128
        $region68: #{tpu_custom_call.1} parent=63 // pred_fallthru
          _
      $region64: #{tpu_custom_call.1} parent=5 // pred_fallthru
        _
    $region6: #{tpu_custom_call.1} parent=1 // loop_footer
      %s22 = sadd.s32 1, %s18
    $region7: #{tpu_custom_call.1} parent=1 // loop_footer_branch
      %17 = sbr.rel target = $region3
    $region8: #{tpu_custom_call.1} parent=1 // loop_exit
      _
    %1271 = vsyncpa [#allocation3], 1
    %s1272 = scalar_lea.sflag [#allocation3], 1
    %1273 = vsyncpa %s1272, 1

</llo_original>
